<compile_context>
chip_gen: v6e
topology: v6e:2x2x1
jax: 0.10.0
libtpu: 0.0.40
codegen_flags: <defaults>
</compile_context>

<pallas_src>
import jax
import jax.numpy as jnp
from jax.experimental import pallas as pl
from jax.experimental.pallas import tpu as pltpu

_LANE = 128
_SUBLANE = 8
# Per-block VMEM budget: 2 operands x 2 pipeline buffers x 2 MiB = 8 MiB,
# comfortably below the smallest default scoped-VMEM limit (16 MiB on v5e)
# and the explicit limit set below (fits v7x's 64 MiB physical VMEM too).
_BLOCK_BYTES_BUDGET = 2 * 1024 * 1024
_VMEM_LIMIT_BYTES = 32 * 1024 * 1024


def _flatten_copy_kernel(x_ref, o_ref):
    # Identity copy of one lane-dense (row_tile, lanes) block resident in VMEM.
    o_ref[...] = x_ref[...]


def _choose_lane_dense_layout(n_elems):
    """View n_elems as (rows, lanes) with lanes % 128 == 0.

    Prefers the widest lane dimension that still leaves >= 8 rows (sublane-
    dense row tiles + a pipelineable grid). Returns None if n_elems is not
    divisible by 128.
    """
    best = None
    for lanes in (2048, 1024, 512, 256, _LANE):
        if n_elems % lanes == 0:
            rows = n_elems // lanes
            if best is None:
                best = (rows, lanes)
            if rows >= _SUBLANE:
                best = (rows, lanes)
                break
    return best


def _choose_row_tile(rows, lanes, itemsize):
    """Largest multiple-of-8 row tile dividing `rows` that fits the budget."""
    if rows < _SUBLANE:
        return rows  # full-extent block is allowed even when not 8-aligned
    max_rows = max(_SUBLANE, _BLOCK_BYTES_BUDGET // (lanes * itemsize))
    cand = min(rows, (max_rows // _SUBLANE) * _SUBLANE)
    while cand >= _SUBLANE:
        if rows % cand == 0:
            return cand
        cand -= _SUBLANE
    return rows  # no multiple-of-8 divisor: fall back to one full block


def flatten_reference(x):
    """Recommended production path: metadata-only reshape, no kernel at all."""
    return x.reshape(x.shape[0], -1)


def flatten_forward(x, *, alias_output_to_input=False):
    """Pallas-kernel-backed Flatten: x -> (B, prod(rest)).

    Set alias_output_to_input=True only when the caller donates `x` (e.g. via
    jax.jit(..., donate_argnums=...)) so the copy runs in place and no second
    HBM buffer is allocated; with a non-donated input XLA would insert a
    defensive copy, so it defaults to False.
    """
    B = x.shape[0]
    F = 1
    for d in x.shape[1:]:
        F *= d
    n = B * F
    itemsize = jnp.dtype(x.dtype).itemsize
    aliases = {0: 0} if alias_output_to_input else {}

    layout = _choose_lane_dense_layout(n)
    if layout is None:
        # Non-128-divisible element count: keep the block equal to the full
        # extent (always legal) rather than emitting masked edge tiles.
        # TODO(synk): pad F up to a multiple of 128 for large, non-aligned
        # activations instead of a single full-extent block.
        x2d = x.reshape(B, F)
        out2d = pl.pallas_call(
            _flatten_copy_kernel,
            out_shape=jax.ShapeDtypeStruct((B, F), x.dtype),
            grid=(1,),
            in_specs=[pl.BlockSpec((B, F), lambda i: (0, 0))],
            out_specs=pl.BlockSpec((B, F), lambda i: (0, 0)),
            input_output_aliases=aliases,
            compiler_params=pltpu.CompilerParams(
                dimension_semantics=("arbitrary",),
                vmem_limit_bytes=_VMEM_LIMIT_BYTES,
            ),
        )(x2d)
        return out2d.reshape(B, F)

    rows, lanes = layout
    row_tile = _choose_row_tile(rows, lanes, itemsize)
    grid = (rows // row_tile,)

    # Row-major collapse: identical element order to torch's .view, so the
    # (rows, lanes) slab and the final (B, F) result are bitwise-equal views.
    x2d = x.reshape(rows, lanes)

    out2d = pl.pallas_call(
        _flatten_copy_kernel,
        out_shape=jax.ShapeDtypeStruct((rows, lanes), x.dtype),
        grid=grid,
        in_specs=[pl.BlockSpec((row_tile, lanes), lambda i: (i, 0))],
        out_specs=pl.BlockSpec((row_tile, lanes), lambda i: (i, 0)),
        input_output_aliases=aliases,
        compiler_params=pltpu.CompilerParams(
            dimension_semantics=("parallel",),  # shards across v7x's 2 TCs
            vmem_limit_bytes=_VMEM_LIMIT_BYTES,
        ),
    )(x2d)
    return out2d.reshape(B, F)


if __name__ == "__main__":
    key = jax.random.PRNGKey(0)
    # Small NCHW input consistent with a conv-net feature map.
    x = jax.random.normal(key, (2, 4, 16, 16), dtype=jnp.float32)

    y = flatten_forward(x)
    y = jax.block_until_ready(y)

    # Verify against the reference semantics of x.view(B, -1).
    ref = flatten_reference(x)
    assert y.shape == (2, 4 * 16 * 16), y.shape
    assert y.dtype == x.dtype
    assert jnp.array_equal(y, ref), "Flatten kernel output mismatch"

    print("KERNEL_OK")
</pallas_src>

<mosaic_0001>
module attributes {stable_mosaic.version = 11 : i64} {
  func.func @_flatten_copy_kernel(%arg0: i32, %arg1: memref<8x256xf32, #tpu.memory_space<vmem>>, %arg2: memref<8x256xf32, #tpu.memory_space<vmem>>) attributes {dimension_semantics = [#tpu.dimension_semantics<parallel>], iteration_bounds = array<i64: 1>, scalar_prefetch = 0 : i64, scratch_operands = 0 : i64, tpu.core_type = #tpu.core_type<tc>, window_params = [{transform_indices = @transform_0, window_bounds = array<i64: 8, 256>}, {transform_indices = @transform_1, window_bounds = array<i64: 8, 256>}]} {
    %c0 = arith.constant 0 : index
    %c0_0 = arith.constant 0 : index
    %0 = vector.load %arg1[%c0, %c0_0] : memref<8x256xf32, #tpu.memory_space<vmem>>, vector<8x256xf32>
    %c0_1 = arith.constant 0 : index
    %c0_2 = arith.constant 0 : index
    %1 = vector.load %arg2[%c0_1, %c0_2] : memref<8x256xf32, #tpu.memory_space<vmem>>, vector<8x256xf32>
    tpu.vector_store %arg2[%c0_1, %c0_2], %0 {strides = array<i32>} : memref<8x256xf32, #tpu.memory_space<vmem>>, vector<8x256xf32>,
    return
  }
  func.func @transform_0(%arg0: i32) -> (i32, i32) {
    %c0_i32 = arith.constant 0 : i32
    %c0_i32_0 = arith.constant 0 : i32
    return %arg0, %c0_i32 : i32, i32
  }
  func.func @transform_1(%arg0: i32) -> (i32, i32) {
    %c0_i32 = arith.constant 0 : i32
    %c0_i32_0 = arith.constant 0 : i32
    return %arg0, %c0_i32 : i32, i32
  }
}

</mosaic_0001>

<llo_original>
// kernel: tpu_custom_call.1
$region0: #{tpu_custom_call.1}
  #allocation0 [shape = 'u32[]', space=smem, size = 0x4, offset = 0x4, fixed_abs, tag = 'smem constant byte address 0x4 - core index']
  #allocation1 [shape = 'u32[144,128]{1,0:T(1,128)}', space=vmem, size = 0x12000, scoped, tag = 'internal scratch']
  %s0 = inlined_call_operand.hbm [shape: f32[8,256], index: 0, kind: input, shape index: {}]
  %s1 = inlined_call_operand.hbm [shape: f32[8,256], index: 1, kind: output, shape index: {}]
  %s2 = sld [smem:[#allocation0]]
  $region18: #{tpu_custom_call.1} parent=0
    _
  %s4 = ssub.s32 1, %s2
  %s5 = scalar_select 0, %s4, %s2
  $region1: #{tpu_custom_call.1} parent=0
    #allocation2 [shape = 'u8[8192]{0}', space=vmem, size = 0x2000, scoped, tag = 'input window, operand 0, single buffered']
    #allocation3 [shape = 's32[1]{0}', space=sflag, size = 0x4, scoped, tag = 'scoped memory for tpu_custom_call.1']
    #allocation4 [shape = 's32[1]{0}', space=sflag, size = 0x4, scoped, tag = 'scoped memory for tpu_custom_call.1']
    #allocation5 [shape = 'u8[8192]{0}', space=vmem, size = 0x2000, scoped, tag = 'output window, operand 0, single buffered']
    %6 = vsyncpa [#allocation3], 0
    %7 = vsyncpa [#allocation4], 0
    // Predicated region
    $region2: #{tpu_custom_call.1} parent=1 // pred_check
      _
    $region3: #{tpu_custom_call.1} parent=1 // pred_check_branch
      %9 = sbr.rel (0) target = $region5
    $region4: #{tpu_custom_call.1} parent=1 // pred_region
      %s11 = ssub.s32 256, 256
      %12 = vsyncadd [#allocation3], %s11
      %s14 = sshll.u32 [#allocation2], 4
      %s15 = int_to_ptr.vmem [resolvable:$true] %s14
      %17 = dma.hbm_to_vmem [thread:$0]  %s0, 256, %s15, [#allocation3]
    $region5: #{tpu_custom_call.1} parent=1 // pred_fallthru
      _
    // Predicated region
    $region6: #{tpu_custom_call.1} parent=1 // pred_check
      _
    $region7: #{tpu_custom_call.1} parent=1 // pred_check_branch
      %19 = sbr.rel (0) target = $region9
    $region8: #{tpu_custom_call.1} parent=1 // pred_region
      %20 = dma.done [#allocation3], 256
    $region9: #{tpu_custom_call.1} parent=1 // pred_fallthru
      _
    %v21 = vld [vmem:[#allocation2] sm:$0xff]
    %v22 = vld [vmem:[#allocation2 + $0x8] sm:$0xff]
    %23 = vst [vmem:[#allocation5] sm:$0xff] %v21
    %24 = vst [vmem:[#allocation5 + $0x8] sm:$0xff] %v22
    // Predicated region
    $region10: #{tpu_custom_call.1} parent=1 // pred_check
      _
    $region11: #{tpu_custom_call.1} parent=1 // pred_check_branch
      %26 = sbr.rel (0) target = $region13
    $region12: #{tpu_custom_call.1} parent=1 // pred_region
      %s28 = ssub.s32 256, 256
      %29 = vsyncadd [#allocation4], %s28
      %s31 = sshll.u32 [#allocation5], 4
      %s32 = int_to_ptr.vmem [resolvable:$true] %s31
      %34 = dma.vmem_to_hbm [thread:$0]  %s32, 256, %s1, [#allocation4]
    $region13: #{tpu_custom_call.1} parent=1 // pred_fallthru
      _
    // Predicated region
    $region14: #{tpu_custom_call.1} parent=1 // pred_check
      _
    $region15: #{tpu_custom_call.1} parent=1 // pred_check_branch
      %36 = sbr.rel (0) target = $region17
    $region16: #{tpu_custom_call.1} parent=1 // pred_region
      %37 = dma.done [#allocation4], 256
    $region17: #{tpu_custom_call.1} parent=1 // pred_fallthru
      _
    %38 = vsyncpa [#allocation3], 1
    %39 = vsyncpa [#allocation4], 1

</llo_original>
